<compile_context>
chip_gen: v6e
topology: v6e:2x2x1
jax: 0.10.0
libtpu: 0.0.40
codegen_flags: <defaults>
</compile_context>

<pallas_src>
import jax
import jax.numpy as jnp
from jax.experimental import pallas as pl
from jax.experimental.pallas import tpu as pltpu


def _round_up(x, m):
    return (x + m - 1) // m * m


def _joiner_kernel(enc_ref, dec_ref,
                   we_ref, wd_ref, bc_ref,
                   wo_ref, bo_ref,
                   out_ref, h_ref):
    # Compute the joiner hidden state once per M tile (first vocab tile) and
    # reuse it for every remaining vocab tile.  Valid only because the vocab
    # axis is innermost and "arbitrary" (see module docstring).
    @pl.when(pl.program_id(1) == 0)
    def _():
        enc = enc_ref[...].astype(we_ref.dtype)
        dec = dec_ref[...].astype(wd_ref.dtype)
        h = jnp.dot(enc, we_ref[...], preferred_element_type=jnp.float32)
        h = h + jnp.dot(dec, wd_ref[...], preferred_element_type=jnp.float32)
        # f32 bias add + tanh, stored as bf16 (MXU consumes bf16 anyway).
        h_ref[...] = jnp.tanh(h + bc_ref[...]).astype(h_ref.dtype)

    out = jnp.dot(h_ref[...], wo_ref[...],
                  preferred_element_type=jnp.float32) + bo_ref[...]
    out_ref[...] = out.astype(out_ref.dtype)


def prepare_joiner_params(params, mxu_dtype=jnp.bfloat16):
    """One-time (model-load) weight prep: transpose layout already (in,out),
    pad the joiner dim J to a 128 multiple, fuse the two projection biases,
    and cast MXU operands to bf16.  Zero padding on J is required for
    correctness of the second matmul's contraction."""
    we, be, wd, bd, wo, bo = params
    Ce, J = we.shape
    Cd = wd.shape[0]
    V = wo.shape[1]
    Jp = _round_up(J, 128)

    we_p = jnp.zeros((Ce, Jp), mxu_dtype).at[:, :J].set(we.astype(mxu_dtype))
    wd_p = jnp.zeros((Cd, Jp), mxu_dtype).at[:, :J].set(wd.astype(mxu_dtype))
    wo_p = jnp.zeros((Jp, V), mxu_dtype).at[:J, :].set(wo.astype(mxu_dtype))
    # Fused projection bias (f32; applied after the f32-accumulated matmuls).
    bc_p = jnp.zeros((1, Jp), jnp.float32).at[0, :J].set(
        (be + bd).astype(jnp.float32))
    bo_p = bo.astype(jnp.float32).reshape(1, V)
    return we_p, wd_p, bc_p, wo_p, bo_p


def joiner_forward(encoder_out, decoder_out, prepared, *,
                   max_tile_m=1024, max_tile_v=2048, out_dtype=None):
    """encoder_out/decoder_out: (N, T, s_range, C_enc/C_dec) -> (N, T, s_range, V)."""
    we_p, wd_p, bc_p, wo_p, bo_p = prepared
    N, T, S, Ce = encoder_out.shape
    Cd = decoder_out.shape[-1]
    Jp = we_p.shape[1]
    V = wo_p.shape[1]
    M = N * T * S
    if out_dtype is None:
        out_dtype = encoder_out.dtype

    # Free reshapes (leading-axis collapse); no pad / cast passes over the
    # activations -- the bf16 cast happens inside the kernel.
    enc2 = encoder_out.reshape(M, Ce)
    dec2 = decoder_out.reshape(M, Cd)

    # Adaptive row tile: one tile for small decode batches, 1024 otherwise.
    if M <= max_tile_m:
        tile_m = max(8, _round_up(M, 8))
    else:
        tile_m = max_tile_m
    # Vocab tile: fully VMEM-resident W_out (constant index_map) when the
    # vocab is small/moderate, else 128-aligned tiles.
    assert max_tile_v % 128 == 0
    tile_v = V if V <= max_tile_v else max_tile_v

    grid = (pl.cdiv(M, tile_m), pl.cdiv(V, tile_v))

    w_itemsize = jnp.dtype(we_p.dtype).itemsize
    cost = pl.CostEstimate(
        flops=2 * M * ((Ce + Cd) * Jp + Jp * V),
        transcendentals=M * Jp,
        bytes_accessed=(enc2.size * enc2.dtype.itemsize
                        + dec2.size * dec2.dtype.itemsize
                        + (we_p.size + wd_p.size + wo_p.size) * w_itemsize
                        + (bc_p.size + bo_p.size) * 4
                        + M * V * jnp.dtype(out_dtype).itemsize),
    )

    out2 = pl.pallas_call(
        _joiner_kernel,
        out_shape=jax.ShapeDtypeStruct((M, V), out_dtype),
        grid_spec=pltpu.PrefetchScalarGridSpec(
            num_scalar_prefetch=0,
            grid=grid,
            in_specs=[
                pl.BlockSpec((tile_m, Ce), lambda i, v: (i, 0)),   # encoder rows
                pl.BlockSpec((tile_m, Cd), lambda i, v: (i, 0)),   # decoder rows
                pl.BlockSpec((Ce, Jp), lambda i, v: (0, 0)),       # W_enc^T (resident)
                pl.BlockSpec((Cd, Jp), lambda i, v: (0, 0)),       # W_dec^T (resident)
                pl.BlockSpec((1, Jp), lambda i, v: (0, 0)),        # fused bias
                pl.BlockSpec((Jp, tile_v), lambda i, v: (0, v)),   # W_out^T tile
                pl.BlockSpec((1, tile_v), lambda i, v: (0, v)),    # b_out tile
            ],
            out_specs=pl.BlockSpec((tile_m, tile_v), lambda i, v: (i, v)),
            # bf16 hidden scratch, reused across vocab tiles.
            scratch_shapes=[pltpu.VMEM((tile_m, Jp), jnp.bfloat16)],
        ),
        compiler_params=pltpu.CompilerParams(
            # M axis shards across TensorCores; vocab axis must stay
            # "arbitrary" because the h scratch is carried across it.
            dimension_semantics=("parallel", "arbitrary"),
            vmem_limit_bytes=48 * 1024 * 1024,
        ),
        cost_estimate=cost,
    )(enc2, dec2, we_p, wd_p, bc_p, wo_p, bo_p)

    return out2.reshape(N, T, S, V)


def joiner_reference(encoder_out, decoder_out, params):
    we, be, wd, bd, wo, bo = params
    logit = encoder_out @ we + be + decoder_out @ wd + bd
    return jnp.tanh(logit) @ wo + bo


def init_params(key, encoder_dim, decoder_dim, joiner_dim, vocab_size):
    ks = jax.random.split(key, 6)
    scale = 0.05
    # weights stored pre-transposed: (in_dim, out_dim)
    we = scale * jax.random.normal(ks[0], (encoder_dim, joiner_dim), jnp.float32)
    be = scale * jax.random.normal(ks[1], (joiner_dim,), jnp.float32)
    wd = scale * jax.random.normal(ks[2], (decoder_dim, joiner_dim), jnp.float32)
    bd = scale * jax.random.normal(ks[3], (joiner_dim,), jnp.float32)
    wo = scale * jax.random.normal(ks[4], (joiner_dim, vocab_size), jnp.float32)
    bo = scale * jax.random.normal(ks[5], (vocab_size,), jnp.float32)
    return we, be, wd, bd, wo, bo


if __name__ == "__main__":
    # Small shapes consistent with Joiner.forward: (N, T, s_range, C)
    N, T, S = 2, 8, 4
    encoder_dim, decoder_dim, joiner_dim, vocab_size = 32, 32, 32, 64

    key = jax.random.PRNGKey(0)
    k_enc, k_dec, k_par = jax.random.split(key, 3)

    encoder_out = jax.random.normal(k_enc, (N, T, S, encoder_dim), jnp.float32)
    decoder_out = jax.random.normal(k_dec, (N, T, S, decoder_dim), jnp.float32)
    params = init_params(k_par, encoder_dim, decoder_dim, joiner_dim, vocab_size)

    # One-time weight prep (model load time), outside the per-call hot path.
    prepared = prepare_joiner_params(params)

    out = joiner_forward(encoder_out, decoder_out, prepared)
    out = jax.block_until_ready(out)

    ref = joiner_reference(encoder_out, decoder_out, params)
    assert out.shape == (N, T, S, vocab_size)
    # bf16 MXU operands with f32 accumulation -> relaxed tolerance vs f32 ref.
    assert jnp.allclose(out, ref, atol=1e-2, rtol=1e-2), "mismatch vs reference"

    print("KERNEL_OK")
</pallas_src>

<mosaic_0001>
module attributes {stable_mosaic.version = 11 : i64} {
  func.func @_joiner_kernel(%arg0: i32, %arg1: i32, %arg2: memref<64x32xf32, #tpu.memory_space<vmem>>, %arg3: memref<64x32xf32, #tpu.memory_space<vmem>>, %arg4: memref<32x128xbf16, #tpu.memory_space<vmem>>, %arg5: memref<32x128xbf16, #tpu.memory_space<vmem>>, %arg6: memref<1x128xf32, #tpu.memory_space<vmem>>, %arg7: memref<128x64xbf16, #tpu.memory_space<vmem>>, %arg8: memref<1x64xf32, #tpu.memory_space<vmem>>, %arg9: memref<64x64xf32, #tpu.memory_space<vmem>>, %arg10: memref<64x128xbf16, #tpu.memory_space<vmem>>) attributes {dimension_semantics = [#tpu.dimension_semantics<parallel>, #tpu.dimension_semantics<arbitrary>], iteration_bounds = array<i64: 1, 1>, scalar_prefetch = 0 : i64, scratch_operands = 1 : i64, tpu.core_type = #tpu.core_type<tc>, window_params = [{transform_indices = @transform_0, window_bounds = array<i64: 64, 32>}, {transform_indices = @transform_1, window_bounds = array<i64: 64, 32>}, {pipeline_mode = #tpu.pipeline_mode<synchronous>, transform_indices = @transform_2, window_bounds = array<i64: 32, 128>}, {pipeline_mode = #tpu.pipeline_mode<synchronous>, transform_indices = @transform_3, window_bounds = array<i64: 32, 128>}, {pipeline_mode = #tpu.pipeline_mode<synchronous>, transform_indices = @transform_4, window_bounds = array<i64: 1, 128>}, {transform_indices = @transform_5, window_bounds = array<i64: 128, 64>}, {transform_indices = @transform_6, window_bounds = array<i64: 1, 64>}, {transform_indices = @transform_7, window_bounds = array<i64: 64, 64>}]} {
    %c0_i32 = arith.constant 0 : i32
    %0 = arith.cmpi eq, %arg1, %c0_i32 : i32
    %1 = arith.extui %0 : i1 to i32
    %c0_i32_0 = arith.constant 0 : i32
    %2 = arith.cmpi ne, %1, %c0_i32_0 : i32
    scf.if %2 {
      %c0_8 = arith.constant 0 : index
      %c0_9 = arith.constant 0 : index
      %10 = vector.load %arg2[%c0_8, %c0_9] : memref<64x32xf32, #tpu.memory_space<vmem>>, vector<64x32xf32>
      %11 = arith.truncf %10 : vector<64x32xf32> to vector<64x32xbf16>
      %c0_10 = arith.constant 0 : index
      %c0_11 = arith.constant 0 : index
      %12 = vector.load %arg3[%c0_10, %c0_11] : memref<64x32xf32, #tpu.memory_space<vmem>>, vector<64x32xf32>
      %13 = arith.truncf %12 : vector<64x32xf32> to vector<64x32xbf16>
      %c0_12 = arith.constant 0 : index
      %c0_13 = arith.constant 0 : index
      %14 = vector.load %arg4[%c0_12, %c0_13] : memref<32x128xbf16, #tpu.memory_space<vmem>>, vector<32x128xbf16>
      %cst_14 = arith.constant dense<0.000000e+00> : vector<64x128xf32>
      %15 = tpu.matmul %11, %14, %cst_14 {dimension_numbers = #tpu.dot_dimension_numbers<[1], [0], [0], [1], [0, 0, 1, 1], [], []>} : vector<64x32xbf16>, vector<32x128xbf16>, vector<64x128xf32> -> vector<64x128xf32>
      %c0_15 = arith.constant 0 : index
      %c0_16 = arith.constant 0 : index
      %16 = vector.load %arg5[%c0_15, %c0_16] : memref<32x128xbf16, #tpu.memory_space<vmem>>, vector<32x128xbf16>
      %cst_17 = arith.constant dense<0.000000e+00> : vector<64x128xf32>
      %17 = tpu.matmul %13, %16, %cst_17 {dimension_numbers = #tpu.dot_dimension_numbers<[1], [0], [0], [1], [0, 0, 1, 1], [], []>} : vector<64x32xbf16>, vector<32x128xbf16>, vector<64x128xf32> -> vector<64x128xf32>
      %18 = arith.addf %15, %17 : vector<64x128xf32>
      %c0_18 = arith.constant 0 : index
      %c0_19 = arith.constant 0 : index
      %19 = vector.load %arg6[%c0_18, %c0_19] : memref<1x128xf32, #tpu.memory_space<vmem>>, vector<1x128xf32>
      %20 = vector.broadcast %19 : vector<1x128xf32> to vector<64x128xf32>
      %21 = arith.addf %18, %20 : vector<64x128xf32>
      %22 = math.tanh %21 : vector<64x128xf32>
      %23 = arith.truncf %22 : vector<64x128xf32> to vector<64x128xbf16>
      %c0_20 = arith.constant 0 : index
      %c0_21 = arith.constant 0 : index
      %24 = vector.load %arg10[%c0_20, %c0_21] : memref<64x128xbf16, #tpu.memory_space<vmem>>, vector<64x128xbf16>
      tpu.vector_store %arg10[%c0_20, %c0_21], %23 {strides = array<i32>} : memref<64x128xbf16, #tpu.memory_space<vmem>>, vector<64x128xbf16>,
    } else {
    }
    %c0 = arith.constant 0 : index
    %c0_1 = arith.constant 0 : index
    %3 = vector.load %arg10[%c0, %c0_1] : memref<64x128xbf16, #tpu.memory_space<vmem>>, vector<64x128xbf16>
    %c0_2 = arith.constant 0 : index
    %c0_3 = arith.constant 0 : index
    %4 = vector.load %arg7[%c0_2, %c0_3] : memref<128x64xbf16, #tpu.memory_space<vmem>>, vector<128x64xbf16>
    %cst = arith.constant dense<0.000000e+00> : vector<64x64xf32>
    %5 = tpu.matmul %3, %4, %cst {dimension_numbers = #tpu.dot_dimension_numbers<[1], [0], [0], [1], [0, 0, 1, 1], [], []>} : vector<64x128xbf16>, vector<128x64xbf16>, vector<64x64xf32> -> vector<64x64xf32>
    %c0_4 = arith.constant 0 : index
    %c0_5 = arith.constant 0 : index
    %6 = vector.load %arg8[%c0_4, %c0_5] : memref<1x64xf32, #tpu.memory_space<vmem>>, vector<1x64xf32>
    %7 = vector.broadcast %6 : vector<1x64xf32> to vector<64x64xf32>
    %8 = arith.addf %5, %7 : vector<64x64xf32>
    %c0_6 = arith.constant 0 : index
    %c0_7 = arith.constant 0 : index
    %9 = vector.load %arg9[%c0_6, %c0_7] : memref<64x64xf32, #tpu.memory_space<vmem>>, vector<64x64xf32>
    tpu.vector_store %arg9[%c0_6, %c0_7], %8 {strides = array<i32>} : memref<64x64xf32, #tpu.memory_space<vmem>>, vector<64x64xf32>,
    return
  }
  func.func @transform_0(%arg0: i32, %arg1: i32) -> (i32, i32) {
    %c0_i32 = arith.constant 0 : i32
    %c0_i32_0 = arith.constant 0 : i32
    return %arg0, %c0_i32 : i32, i32
  }
  func.func @transform_1(%arg0: i32, %arg1: i32) -> (i32, i32) {
    %c0_i32 = arith.constant 0 : i32
    %c0_i32_0 = arith.constant 0 : i32
    return %arg0, %c0_i32 : i32, i32
  }
  func.func @transform_2(%arg0: i32, %arg1: i32) -> (i32, i32) {
    %c0_i32 = arith.constant 0 : i32
    %c0_i32_0 = arith.constant 0 : i32
    %c0_i32_1 = arith.constant 0 : i32
    return %c0_i32, %c0_i32_0 : i32, i32
  }
  func.func @transform_3(%arg0: i32, %arg1: i32) -> (i32, i32) {
    %c0_i32 = arith.constant 0 : i32
    %c0_i32_0 = arith.constant 0 : i32
    %c0_i32_1 = arith.constant 0 : i32
    return %c0_i32, %c0_i32_0 : i32, i32
  }
  func.func @transform_4(%arg0: i32, %arg1: i32) -> (i32, i32) {
    %c0_i32 = arith.constant 0 : i32
    %c0_i32_0 = arith.constant 0 : i32
    %c0_i32_1 = arith.constant 0 : i32
    return %c0_i32, %c0_i32_0 : i32, i32
  }
  func.func @transform_5(%arg0: i32, %arg1: i32) -> (i32, i32) {
    %c0_i32 = arith.constant 0 : i32
    %c0_i32_0 = arith.constant 0 : i32
    return %c0_i32, %arg1 : i32, i32
  }
  func.func @transform_6(%arg0: i32, %arg1: i32) -> (i32, i32) {
    %c0_i32 = arith.constant 0 : i32
    %c0_i32_0 = arith.constant 0 : i32
    return %c0_i32, %arg1 : i32, i32
  }
  func.func @transform_7(%arg0: i32, %arg1: i32) -> (i32, i32) {
    %c0_i32 = arith.constant 0 : i32
    return %arg0, %arg1 : i32, i32
  }
}

</mosaic_0001>

<llo_original>
// kernel: tpu_custom_call.1
$region0: #{tpu_custom_call.1}
  #allocation0 [shape = 'u32[]', space=smem, size = 0x4, offset = 0x4, fixed_abs, tag = 'smem constant byte address 0x4 - core index']
  #allocation1 [shape = 'u32[144,128]{1,0:T(1,128)}', space=vmem, size = 0x12000, scoped, tag = 'internal scratch']
  #allocation2 [shape = 'bf16[64,128]{1,0:T(8,128)(2,1)}', space=vmem, size = 0x4000, scoped, tag = 'scratch operand']
  %s0 = inlined_call_operand.vmem [shape: f32[64,32], index: 0, kind: input, shape index: {}]
  %s1 = inlined_call_operand.vmem [shape: f32[64,32], index: 1, kind: input, shape index: {}]
  %s2 = inlined_call_operand.vmem [shape: bf16[32,128], index: 2, kind: input, shape index: {}]
  %s3 = inlined_call_operand.vmem [shape: bf16[32,128], index: 3, kind: input, shape index: {}]
  %s4 = inlined_call_operand.vmem [shape: f32[1,128], index: 4, kind: input, shape index: {}]
  %s5 = inlined_call_operand.vmem [shape: bf16[128,64], index: 5, kind: input, shape index: {}]
  %s6 = inlined_call_operand.vmem [shape: f32[1,64], index: 6, kind: input, shape index: {}]
  %s7 = inlined_call_operand.hbm [shape: f32[64,64], index: 7, kind: output, shape index: {}]
  %s8 = sld [smem:[#allocation0]]
  $region42: #{tpu_custom_call.1} parent=0
    _
  %s10 = ssub.s32 1, %s8
  %s11 = scalar_select 0, %s10, %s8
  $region1: #{tpu_custom_call.1} parent=0
    #allocation3 [shape = 'u8[32768]{0}', space=vmem, size = 0x8000, scoped, tag = 'output window, operand 0, single buffered']
    #allocation4 [shape = 's32[1]{0}', space=sflag, size = 0x4, scoped, tag = 'scoped memory for tpu_custom_call.1']
    %12 = vsyncpa [#allocation4], 0
    // Predicated region
    $region2: #{tpu_custom_call.1} parent=1 // pred_check
      _
    $region3: #{tpu_custom_call.1} parent=1 // pred_check_branch
      %14 = sbr.rel (0) target = $region5
    $region4: #{tpu_custom_call.1} parent=1 // pred_region
      _
    $region5: #{tpu_custom_call.1} parent=1 // pred_fallthru
      _
    // Predicated region
    $region6: #{tpu_custom_call.1} parent=1 // pred_check
      _
    $region7: #{tpu_custom_call.1} parent=1 // pred_check_branch
      %16 = sbr.rel (0) target = $region9
    $region8: #{tpu_custom_call.1} parent=1 // pred_region
      _
    $region9: #{tpu_custom_call.1} parent=1 // pred_fallthru
      _
    // Predicated region
    $region10: #{tpu_custom_call.1} parent=1 // pred_check
      _
    $region11: #{tpu_custom_call.1} parent=1 // pred_check_branch
      %18 = sbr.rel (0) target = $region13
    $region12: #{tpu_custom_call.1} parent=1 // pred_region
      _
    $region13: #{tpu_custom_call.1} parent=1 // pred_fallthru
      _
    // Predicated region
    $region14: #{tpu_custom_call.1} parent=1 // pred_check
      _
    $region15: #{tpu_custom_call.1} parent=1 // pred_check_branch
      %20 = sbr.rel (0) target = $region17
    $region16: #{tpu_custom_call.1} parent=1 // pred_region
      _
    $region17: #{tpu_custom_call.1} parent=1 // pred_fallthru
      _
    // Predicated region
    $region18: #{tpu_custom_call.1} parent=1 // pred_check
      _
    $region19: #{tpu_custom_call.1} parent=1 // pred_check_branch
      %22 = sbr.rel (0) target = $region21
    $region20: #{tpu_custom_call.1} parent=1 // pred_region
      _
    $region21: #{tpu_custom_call.1} parent=1 // pred_fallthru
      _
    // Predicated region
    $region22: #{tpu_custom_call.1} parent=1 // pred_check
      _
    $region23: #{tpu_custom_call.1} parent=1 // pred_check_branch
      %24 = sbr.rel (0) target = $region25
    $region24: #{tpu_custom_call.1} parent=1 // pred_region
      _
    $region25: #{tpu_custom_call.1} parent=1 // pred_fallthru
      _
    // Predicated region
    $region26: #{tpu_custom_call.1} parent=1 // pred_check
      _
    $region27: #{tpu_custom_call.1} parent=1 // pred_check_branch
      %26 = sbr.rel (0) target = $region29
    $region28: #{tpu_custom_call.1} parent=1 // pred_region
      _
    $region29: #{tpu_custom_call.1} parent=1 // pred_fallthru
      _
    %p28 = scmp.eq.s32.totalorder 0, 0
    // Predicated region
    $region30: #{tpu_custom_call.1} parent=1 // pred_check
      %p29 = pneg %p28
    $region31: #{tpu_custom_call.1} parent=1 // pred_check_branch
      %31 = sbr.rel (%p29) target = $region33
    $region32: #{tpu_custom_call.1} parent=1 // pred_region
      %v32 = vld [vmem:[%s0] sm:$0xff]
      %v33 = vld [vmem:[%s0 + $0x8] sm:$0xff]
      %v34 = vld [vmem:[%s0 + $0x10] sm:$0xff]
      %v35 = vld [vmem:[%s0 + $0x18] sm:$0xff]
      %v36 = vld [vmem:[%s0 + $0x20] sm:$0xff]
      %v37 = vld [vmem:[%s0 + $0x28] sm:$0xff]
      %v38 = vld [vmem:[%s0 + $0x30] sm:$0xff]
      %v39 = vld [vmem:[%s0 + $0x38] sm:$0xff]
      %v40 = vpack.c.bf16 %v33, %v32
      %v41 = vpack.c.bf16 %v35, %v34
      %v42 = vpack.c.bf16 %v37, %v36
      %v43 = vpack.c.bf16 %v39, %v38
      %v44 = vld [vmem:[%s1] sm:$0xff]
      %v45 = vld [vmem:[%s1 + $0x8] sm:$0xff]
      %v46 = vld [vmem:[%s1 + $0x10] sm:$0xff]
      %v47 = vld [vmem:[%s1 + $0x18] sm:$0xff]
      %v48 = vld [vmem:[%s1 + $0x20] sm:$0xff]
      %v49 = vld [vmem:[%s1 + $0x28] sm:$0xff]
      %v50 = vld [vmem:[%s1 + $0x30] sm:$0xff]
      %v51 = vld [vmem:[%s1 + $0x38] sm:$0xff]
      %v52 = vpack.c.bf16 %v45, %v44
      %v53 = vpack.c.bf16 %v47, %v46
      %v54 = vpack.c.bf16 %v49, %v48
      %v55 = vpack.c.bf16 %v51, %v50
      %v56 = vld [vmem:[%s2] sm:$0xf]
      %v57 = vld [vmem:[%s2 + $0x4] sm:$0xf]
      %v58 = vld [vmem:[%s2 + $0x8] sm:$0xf]
      %v59 = vld [vmem:[%s2 + $0xc] sm:$0xf]
      %v60 = vld [vmem:[%s3] sm:$0xf]
      %v61 = vld [vmem:[%s3 + $0x4] sm:$0xf]
      %v62 = vld [vmem:[%s3 + $0x8] sm:$0xf]
      %v63 = vld [vmem:[%s3 + $0xc] sm:$0xf]
      %v68 = vunpack.c.l.b16 %v60
      %v69 = vunpack.c.l.b16 %v61
      %v70 = vunpack.c.l.b16 %v62
      %v71 = vunpack.c.l.b16 %v63
      %v72 = vpack.c.b16 %v69, %v68
      %v73 = vpack.c.b16 %v71, %v70
      %vm76 = vcmask 261120
      %v78 = vsel %vm76, %v52, 0
      %v81 = vsel %vm76, %v53, 0
      %v84 = vsel %vm76, %v54, 0
      %v87 = vsel %vm76, %v55, 0
      %89 = vmatprep.subr.bf16.mxu0 0
      %90 = vmatpush1.bf16.msra.mxu0 0
      %91 = vmatprep.subr.bf16.mxu0 0
      %92 = vmatpush1.bf16.msra.mxu0 0
      %93 = vmatprep.subr.bf16.mxu0 0
      %94 = vmatpush1.bf16.msra.mxu0 0
      %95 = vmatprep.subr.bf16.mxu0 0
      %96 = vmatpush1.bf16.msra.mxu0 0
      %97 = vmatprep.subr.bf16.mxu0 0
      %98 = vmatpush1.bf16.msra.mxu0 0
      %99 = vmatprep.subr.bf16.mxu0 0
      %100 = vmatpush1.bf16.msra.mxu0 0
      %101 = vmatprep.subr.bf16.mxu0 0
      %102 = vmatpush1.bf16.msra.mxu0 %v73
      %103 = vmatprep.subr.bf16.mxu0 0
      %104 = vmatpush1.bf16.msra.mxu0 %v72
      %105 = vmatprep.subr.bf16.mxu0 0
      %106 = vmatpush2.bf16.msra.mxu0 0
      %107 = vmatprep.subr.bf16.mxu0 0
      %108 = vmatpush2.bf16.msra.mxu0 0
      %109 = vmatprep.subr.bf16.mxu0 0
      %110 = vmatpush2.bf16.msra.mxu0 0
      %111 = vmatprep.subr.bf16.mxu0 0
      %112 = vmatpush2.bf16.msra.mxu0 0
      %113 = vmatprep.subr.bf16.mxu0 0
      %114 = vmatpush2.bf16.msra.mxu0 0
      %115 = vmatprep.subr.bf16.mxu0 0
      %116 = vmatpush2.bf16.msra.mxu0 0
      %117 = vmatprep.subr.bf16.mxu0 0
      %118 = vmatpush2.bf16.msra.mxu0 0
      %119 = vmatprep.subr.bf16.mxu0 0
      %120 = vmatpush2.bf16.msra.mxu0 0
      %121 = vmatprep.mubr.bf16.mxu0 0
      %122 = vmatmul.mubr.bf16.gmra.mxu0 %v78
      %v123 = vpop.f32.mrf.mxu0
      %v124 = vadd.f32 0.0, %v123
      %v125 = vpop.f32.mrf.mxu0
      %v126 = vpop.f32.mrf.mxu0
      %v127 = vadd.f32 0.0, %v126
      %v128 = vpop.f32.mrf.mxu0
      %129 = vmatprep.mubr.bf16.mxu0 0
      %130 = vmatmul.mubr.bf16.gmra.mxu0 %v81
      %v131 = vpop.f32.mrf.mxu0
      %v132 = vadd.f32 0.0, %v131
      %v133 = vpop.f32.mrf.mxu0
      %v134 = vpop.f32.mrf.mxu0
      %v135 = vadd.f32 0.0, %v134
      %v136 = vpop.f32.mrf.mxu0
      %137 = vmatprep.mubr.bf16.mxu0 0
      %138 = vmatmul.mubr.bf16.gmra.mxu0 %v84
      %v139 = vpop.f32.mrf.mxu0
      %v140 = vadd.f32 0.0, %v139
      %v141 = vpop.f32.mrf.mxu0
      %v142 = vpop.f32.mrf.mxu0
      %v143 = vadd.f32 0.0, %v142
      %v144 = vpop.f32.mrf.mxu0
      %145 = vmatprep.mubr.bf16.mxu0 0
      %146 = vmatmul.mubr.bf16.gmra.mxu0 %v87
      %v147 = vpop.f32.mrf.mxu0
      %v148 = vadd.f32 0.0, %v147
      %v149 = vpop.f32.mrf.mxu0
      %v150 = vpop.f32.mrf.mxu0
      %v151 = vadd.f32 0.0, %v150
      %v152 = vpop.f32.mrf.mxu0
      %153 = vdwg.mxu0
      %v158 = vunpack.c.l.b16 %v56
      %v159 = vunpack.c.l.b16 %v57
      %v160 = vunpack.c.l.b16 %v58
      %v161 = vunpack.c.l.b16 %v59
      %v162 = vpack.c.b16 %v159, %v158
      %v163 = vpack.c.b16 %v161, %v160
      %v167 = vsel %vm76, %v40, 0
      %v170 = vsel %vm76, %v41, 0
      %v173 = vsel %vm76, %v42, 0
      %v176 = vsel %vm76, %v43, 0
      %178 = vmatprep.subr.bf16.mxu0 0
      %179 = vmatpush1.bf16.msra.mxu0 0
      %180 = vmatprep.subr.bf16.mxu0 0
      %181 = vmatpush1.bf16.msra.mxu0 0
      %182 = vmatprep.subr.bf16.mxu0 0
      %183 = vmatpush1.bf16.msra.mxu0 0
      %184 = vmatprep.subr.bf16.mxu0 0
      %185 = vmatpush1.bf16.msra.mxu0 0
      %186 = vmatprep.subr.bf16.mxu0 0
      %187 = vmatpush1.bf16.msra.mxu0 0
      %188 = vmatprep.subr.bf16.mxu0 0
      %189 = vmatpush1.bf16.msra.mxu0 0
      %190 = vmatprep.subr.bf16.mxu0 0
      %191 = vmatpush1.bf16.msra.mxu0 %v163
      %192 = vmatprep.subr.bf16.mxu0 0
      %193 = vmatpush1.bf16.msra.mxu0 %v162
      %194 = vmatprep.subr.bf16.mxu0 0
      %195 = vmatpush2.bf16.msra.mxu0 0
      %196 = vmatprep.subr.bf16.mxu0 0
      %197 = vmatpush2.bf16.msra.mxu0 0
      %198 = vmatprep.subr.bf16.mxu0 0
      %199 = vmatpush2.bf16.msra.mxu0 0
      %200 = vmatprep.subr.bf16.mxu0 0
      %201 = vmatpush2.bf16.msra.mxu0 0
      %202 = vmatprep.subr.bf16.mxu0 0
      %203 = vmatpush2.bf16.msra.mxu0 0
      %204 = vmatprep.subr.bf16.mxu0 0
      %205 = vmatpush2.bf16.msra.mxu0 0
      %206 = vmatprep.subr.bf16.mxu0 0
      %207 = vmatpush2.bf16.msra.mxu0 0
      %208 = vmatprep.subr.bf16.mxu0 0
      %209 = vmatpush2.bf16.msra.mxu0 0
      %210 = vmatprep.mubr.bf16.mxu0 0
      %211 = vmatmul.mubr.bf16.gmra.mxu0 %v167
      %v212 = vpop.f32.mrf.mxu0
      %v213 = vadd.f32 %v124, %v212
      %v214 = vpop.f32.mrf.mxu0
      %v215 = vpop.f32.mrf.mxu0
      %v216 = vadd.f32 %v127, %v215
      %v217 = vpop.f32.mrf.mxu0
      %218 = vmatprep.mubr.bf16.mxu0 0
      %219 = vmatmul.mubr.bf16.gmra.mxu0 %v170
      %v220 = vpop.f32.mrf.mxu0
      %v221 = vadd.f32 %v132, %v220
      %v222 = vpop.f32.mrf.mxu0
      %v223 = vpop.f32.mrf.mxu0
      %v224 = vadd.f32 %v135, %v223
      %v225 = vpop.f32.mrf.mxu0
      %226 = vmatprep.mubr.bf16.mxu0 0
      %227 = vmatmul.mubr.bf16.gmra.mxu0 %v173
      %v228 = vpop.f32.mrf.mxu0
      %v229 = vadd.f32 %v140, %v228
      %v230 = vpop.f32.mrf.mxu0
      %v231 = vpop.f32.mrf.mxu0
      %v232 = vadd.f32 %v143, %v231
      %v233 = vpop.f32.mrf.mxu0
      %234 = vmatprep.mubr.bf16.mxu0 0
      %235 = vmatmul.mubr.bf16.gmra.mxu0 %v176
      %v236 = vpop.f32.mrf.mxu0
      %v237 = vadd.f32 %v148, %v236
      %v238 = vpop.f32.mrf.mxu0
      %v239 = vpop.f32.mrf.mxu0
      %v240 = vadd.f32 %v151, %v239
      %v241 = vpop.f32.mrf.mxu0
      %242 = vdwg.mxu0
      %v243 = vld [vmem:[%s4] sm:$0x1]
      %v245 = vlaneseq
      %v246 = vshrl.u32 %v245, 7
      %v247 = vsub.s32 0, %v246
      %v248 = vrot.slane %v243, %v247
      %v250 = vadd.f32 %v213, %v248
      %v251 = vadd.f32 %v216, %v248
      %v252 = vadd.f32 %v221, %v248
      %v253 = vadd.f32 %v224, %v248
      %v254 = vadd.f32 %v229, %v248
      %v255 = vadd.f32 %v232, %v248
      %v256 = vadd.f32 %v237, %v248
      %v257 = vadd.f32 %v240, %v248
      %v258 = vtanh.pop %v250
      %v259 = vtanh.pop %v251
      %v260 = vtanh.pop %v252
      %v261 = vtanh.pop %v253
      %v262 = vtanh.pop %v254
      %v263 = vtanh.pop %v255
      %v264 = vtanh.pop %v256
      %v265 = vtanh.pop %v257
      %v266 = vpack.c.bf16 %v259, %v258
      %v267 = vpack.c.bf16 %v261, %v260
      %v268 = vpack.c.bf16 %v263, %v262
      %v269 = vpack.c.bf16 %v265, %v264
      %v274 = vunpack.c.l.b16 %v266
      %v275 = vunpack.c.h.b16 %v266
      %v276 = vunpack.c.l.b16 %v267
      %v277 = vunpack.c.h.b16 %v267
      %v278 = vunpack.c.l.b16 %v268
      %v279 = vunpack.c.h.b16 %v268
      %v280 = vunpack.c.l.b16 %v269
      %v281 = vunpack.c.h.b16 %v269
      %v282 = vpack.c.b16 %v274, %v274
      %v283 = vpack.c.b16 %v275, %v275
      %v284 = vpack.c.b16 %v276, %v276
      %v285 = vpack.c.b16 %v277, %v277
      %v286 = vpack.c.b16 %v278, %v278
      %v287 = vpack.c.b16 %v279, %v279
      %v288 = vpack.c.b16 %v280, %v280
      %v289 = vpack.c.b16 %v281, %v281
      %298 = vst [vmem:[#allocation2] sm:$0xf] %v282
      %299 = vst [vmem:[#allocation2 + $0x4] sm:$0xf] %v283
      %300 = vst [vmem:[#allocation2 + $0x8] sm:$0xf] %v284
      %301 = vst [vmem:[#allocation2 + $0xc] sm:$0xf] %v285
      %302 = vst [vmem:[#allocation2 + $0x10] sm:$0xf] %v286
      %303 = vst [vmem:[#allocation2 + $0x14] sm:$0xf] %v287
      %304 = vst [vmem:[#allocation2 + $0x18] sm:$0xf] %v288
      %305 = vst [vmem:[#allocation2 + $0x1c] sm:$0xf] %v289
    $region33: #{tpu_custom_call.1} parent=1 // pred_fallthru
      _
    %v306 = vld [vmem:[#allocation2] sm:$0xf]
    %v307 = vld [vmem:[#allocation2 + $0x4] sm:$0xf]
    %v308 = vld [vmem:[#allocation2 + $0x8] sm:$0xf]
    %v309 = vld [vmem:[#allocation2 + $0xc] sm:$0xf]
    %v310 = vld [vmem:[#allocation2 + $0x10] sm:$0xf]
    %v311 = vld [vmem:[#allocation2 + $0x14] sm:$0xf]
    %v312 = vld [vmem:[#allocation2 + $0x18] sm:$0xf]
    %v313 = vld [vmem:[#allocation2 + $0x1c] sm:$0xf]
    %v314 = vld [vmem:[%s5] sm:$0xf]
    %v315 = vld [vmem:[%s5 + $0x4] sm:$0xf]
    %v316 = vld [vmem:[%s5 + $0x8] sm:$0xf]
    %v317 = vld [vmem:[%s5 + $0xc] sm:$0xf]
    %v318 = vld [vmem:[%s5 + $0x10] sm:$0xf]
    %v319 = vld [vmem:[%s5 + $0x14] sm:$0xf]
    %v320 = vld [vmem:[%s5 + $0x18] sm:$0xf]
    %v321 = vld [vmem:[%s5 + $0x1c] sm:$0xf]
    %v322 = vld [vmem:[%s5 + $0x20] sm:$0xf]
    %v323 = vld [vmem:[%s5 + $0x24] sm:$0xf]
    %v324 = vld [vmem:[%s5 + $0x28] sm:$0xf]
    %v325 = vld [vmem:[%s5 + $0x2c] sm:$0xf]
    %v326 = vld [vmem:[%s5 + $0x30] sm:$0xf]
    %v327 = vld [vmem:[%s5 + $0x34] sm:$0xf]
    %v328 = vld [vmem:[%s5 + $0x38] sm:$0xf]
    %v329 = vld [vmem:[%s5 + $0x3c] sm:$0xf]
    %v330 = vld [vmem:[%s6] sm:$0x1]
    %v332 = vlaneseq
    %v333 = vshrl.u32 %v332, 7
    %v334 = vsub.s32 0, %v333
    %v335 = vrot.slane %v330, %v334
    %v345 = vunpack.c.l.b16 %v306
    %v346 = vunpack.c.l.b16 %v307
    %v347 = vunpack.c.l.b16 %v308
    %v348 = vunpack.c.l.b16 %v309
    %v349 = vunpack.c.l.b16 %v310
    %v350 = vunpack.c.l.b16 %v311
    %v351 = vunpack.c.l.b16 %v312
    %v352 = vunpack.c.l.b16 %v313
    %v353 = vpack.c.b16 %v346, %v345
    %v354 = vpack.c.b16 %v348, %v347
    %v355 = vpack.c.b16 %v350, %v349
    %v356 = vpack.c.b16 %v352, %v351
    %v377 = vunpack.c.l.b16 %v314
    %v378 = vunpack.c.l.b16 %v315
    %v379 = vunpack.c.l.b16 %v316
    %v380 = vunpack.c.l.b16 %v317
    %v381 = vunpack.c.l.b16 %v318
    %v382 = vunpack.c.l.b16 %v319
    %v383 = vunpack.c.l.b16 %v320
    %v384 = vunpack.c.l.b16 %v321
    %v385 = vunpack.c.l.b16 %v322
    %v386 = vunpack.c.l.b16 %v323
    %v387 = vunpack.c.l.b16 %v324
    %v388 = vunpack.c.l.b16 %v325
    %v389 = vunpack.c.l.b16 %v326
    %v390 = vunpack.c.l.b16 %v327
    %v391 = vunpack.c.l.b16 %v328
    %v392 = vunpack.c.l.b16 %v329
    %v393 = vpack.c.b16 %v378, %v377
    %v394 = vpack.c.b16 %v380, %v379
    %v395 = vpack.c.b16 %v382, %v381
    %v396 = vpack.c.b16 %v384, %v383
    %v397 = vpack.c.b16 %v386, %v385
    %v398 = vpack.c.b16 %v388, %v387
    %v399 = vpack.c.b16 %v390, %v389
    %v400 = vpack.c.b16 %v392, %v391
    %409 = vmatprep.subr.bf16.mxu0 0
    %410 = vmatpush1.bf16.msra.mxu0 %v400
    %411 = vmatprep.subr.bf16.mxu0 0
    %412 = vmatpush1.bf16.msra.mxu0 %v399
    %413 = vmatprep.subr.bf16.mxu0 0
    %414 = vmatpush1.bf16.msra.mxu0 %v398
    %415 = vmatprep.subr.bf16.mxu0 0
    %416 = vmatpush1.bf16.msra.mxu0 %v397
    %417 = vmatprep.subr.bf16.mxu0 0
    %418 = vmatpush1.bf16.msra.mxu0 %v396
    %419 = vmatprep.subr.bf16.mxu0 0
    %420 = vmatpush1.bf16.msra.mxu0 %v395
    %421 = vmatprep.subr.bf16.mxu0 0
    %422 = vmatpush1.bf16.msra.mxu0 %v394
    %423 = vmatprep.subr.bf16.mxu0 0
    %424 = vmatpush1.bf16.msra.mxu0 %v393
    %425 = vmatprep.subr.bf16.mxu0 0
    %426 = vmatpush2.bf16.msra.mxu0 0
    %427 = vmatprep.subr.bf16.mxu0 0
    %428 = vmatpush2.bf16.msra.mxu0 0
    %429 = vmatprep.subr.bf16.mxu0 0
    %430 = vmatpush2.bf16.msra.mxu0 0
    %431 = vmatprep.subr.bf16.mxu0 0
    %432 = vmatpush2.bf16.msra.mxu0 0
    %433 = vmatprep.subr.bf16.mxu0 0
    %434 = vmatpush2.bf16.msra.mxu0 0
    %435 = vmatprep.subr.bf16.mxu0 0
    %436 = vmatpush2.bf16.msra.mxu0 0
    %437 = vmatprep.subr.bf16.mxu0 0
    %438 = vmatpush2.bf16.msra.mxu0 0
    %439 = vmatprep.subr.bf16.mxu0 0
    %440 = vmatpush2.bf16.msra.mxu0 0
    %441 = vmatprep.mubr.bf16.mxu0 0
    %442 = vmatmul.mubr.bf16.gmra.mxu0 %v353
    %v443 = vpop.f32.mrf.mxu0
    %v444 = vadd.f32 %v335, %v443
    %v445 = vpop.f32.mrf.mxu0
    %v446 = vpop.f32.mrf.mxu0
    %v447 = vadd.f32 %v335, %v446
    %v448 = vpop.f32.mrf.mxu0
    %449 = vmatprep.mubr.bf16.mxu0 0
    %450 = vmatmul.mubr.bf16.gmra.mxu0 %v354
    %v451 = vpop.f32.mrf.mxu0
    %v452 = vadd.f32 %v335, %v451
    %v453 = vpop.f32.mrf.mxu0
    %v454 = vpop.f32.mrf.mxu0
    %v455 = vadd.f32 %v335, %v454
    %v456 = vpop.f32.mrf.mxu0
    %457 = vmatprep.mubr.bf16.mxu0 0
    %458 = vmatmul.mubr.bf16.gmra.mxu0 %v355
    %v459 = vpop.f32.mrf.mxu0
    %v460 = vadd.f32 %v335, %v459
    %v461 = vpop.f32.mrf.mxu0
    %v462 = vpop.f32.mrf.mxu0
    %v463 = vadd.f32 %v335, %v462
    %v464 = vpop.f32.mrf.mxu0
    %465 = vmatprep.mubr.bf16.mxu0 0
    %466 = vmatmul.mubr.bf16.gmra.mxu0 %v356
    %v467 = vpop.f32.mrf.mxu0
    %v468 = vadd.f32 %v335, %v467
    %v469 = vpop.f32.mrf.mxu0
    %v470 = vpop.f32.mrf.mxu0
    %v471 = vadd.f32 %v335, %v470
    %v472 = vpop.f32.mrf.mxu0
    %473 = vdwg.mxu0
    %vm474 = vcmask 523264
    %475 = vst.msk [vmem:[#allocation3] sm:$0xff] %vm474, %v444
    %476 = vst.msk [vmem:[#allocation3 + $0x8] sm:$0xff] %vm474, %v447
    %477 = vst.msk [vmem:[#allocation3 + $0x10] sm:$0xff] %vm474, %v452
    %478 = vst.msk [vmem:[#allocation3 + $0x18] sm:$0xff] %vm474, %v455
    %479 = vst.msk [vmem:[#allocation3 + $0x20] sm:$0xff] %vm474, %v460
    %480 = vst.msk [vmem:[#allocation3 + $0x28] sm:$0xff] %vm474, %v463
    %481 = vst.msk [vmem:[#allocation3 + $0x30] sm:$0xff] %vm474, %v468
    %482 = vst.msk [vmem:[#allocation3 + $0x38] sm:$0xff] %vm474, %v471
    // Predicated region
    $region34: #{tpu_custom_call.1} parent=1 // pred_check
      _
    $region35: #{tpu_custom_call.1} parent=1 // pred_check_branch
      %484 = sbr.rel (0) target = $region37
    $region36: #{tpu_custom_call.1} parent=1 // pred_region
      %s486 = ssub.s32 1024, 1024
      %487 = vsyncadd [#allocation4], %s486
      %s488 = sshll.u32 [#allocation3], 4
      %s489 = int_to_ptr.vmem [resolvable:$true] %s488
      %494 = dma.vmem_to_hbm [thread:$0]  %s489, 1024, %s7, [#allocation4], 128, 128, 8
    $region37: #{tpu_custom_call.1} parent=1 // pred_fallthru
      _
    // Predicated region
    $region38: #{tpu_custom_call.1} parent=1 // pred_check
      _
    $region39: #{tpu_custom_call.1} parent=1 // pred_check_branch
      %496 = sbr.rel (0) target = $region41
    $region40: #{tpu_custom_call.1} parent=1 // pred_region
      %497 = dma.done [#allocation4], 1024
    $region41: #{tpu_custom_call.1} parent=1 // pred_fallthru
      _
    %498 = vsyncpa [#allocation4], 1

</llo_original>
